<compile_context>
chip_gen: v7x
topology: tpu7x:2x2x1
jax: 0.10.0
libtpu: 0.0.40
codegen_flags: <defaults>
</compile_context>

<pallas_src>
import functools

import jax
import jax.numpy as jnp
from jax import lax
from jax.experimental import pallas as pl
from jax.experimental.pallas import tpu as pltpu


def _round_up(x, m):
    return ((x + m - 1) // m) * m


def _dice_sums_kernel(labels_ref, logits_ref, inter_ref, card_ref, *,
                      hw_valid, t_hw, c, need_mask):
    j = pl.program_id(1)

    # Per-batch accumulator blocks are resident across the (arbitrary) spatial
    # axis; zero them at the start of each batch's reduction.
    @pl.when(j == 0)
    def _():
        inter_ref[...] = jnp.zeros_like(inter_ref)
        card_ref[...] = jnp.zeros_like(card_ref)

    # [C, t_hw]: class on sublanes, spatial on lanes (lane-dense).
    x = logits_ref[0].astype(jnp.float32)
    # Stable softmax over the class (sublane) axis.
    m = jnp.max(x, axis=0, keepdims=True)                        # [1, t_hw]
    e = jnp.exp(x - m)
    probas = e / jnp.sum(e, axis=0, keepdims=True)               # [C, t_hw]

    # One-hot encode labels against a class iota (labels broadcast across
    # sublanes; padded labels == -1 never match any class).
    labels = labels_ref[0]                                       # [1, t_hw]
    class_iota = lax.broadcasted_iota(jnp.int32, (c, t_hw), 0)   # [C, t_hw]
    one_hot = (labels == class_iota).astype(jnp.float32)         # [C, t_hw]

    def _accum(p, oh):
        inter_ref[...] += jnp.sum(p * oh, axis=1, keepdims=True)[None]
        card_ref[...] += jnp.sum(p + oh, axis=1, keepdims=True)[None]

    if need_mask:
        # Only the last spatial tile can contain padded columns; keep the
        # mask math off the hot path of every other tile.
        is_last = j == pl.num_programs(1) - 1

        @pl.when(jnp.logical_not(is_last))
        def _():
            _accum(probas, one_hot)

        @pl.when(is_last)
        def _():
            col = lax.broadcasted_iota(jnp.int32, (1, t_hw), 1)
            valid = (col < (hw_valid - j * t_hw)).astype(jnp.float32)
            _accum(probas * valid, one_hot * valid)
    else:
        _accum(probas, one_hot)


def _pick_spatial_tile(hw, c, itemsize=4, target_bytes=2 * 1024 * 1024):
    """Lane-dense spatial tile, ~2 MiB of logits per block (VMEM-safe)."""
    t = (target_bytes // (c * itemsize)) // 128 * 128
    t = max(512, min(t, 128 * 1024))
    return min(t, _round_up(hw, 128))


def dice_loss_pallas(logits, true, eps=1e-7):
    """logits: [B, C, H, W] float; true: [B, 1, H, W] integer labels."""
    B, C, H, W = logits.shape
    HW = H * W

    # Free reshapes only -- no transpose, no extra HBM pass over the logits.
    # TODO(synk): stream logits as bf16 if the upstream producer emits bf16
    # (halves HBM traffic of the dominant stream); inputs here are f32.
    logits3 = logits.reshape(B, C, HW)
    labels3 = true.reshape(B, 1, HW).astype(jnp.int32)

    t_hw = _pick_spatial_tile(HW, C, jnp.dtype(logits.dtype).itemsize)
    hw_pad = _round_up(HW, t_hw)
    pad = hw_pad - HW
    if pad:
        logits3 = jnp.pad(logits3, ((0, 0), (0, 0), (0, pad)))
        labels3 = jnp.pad(labels3, ((0, 0), (0, 0), (0, pad)),
                          constant_values=-1)
    n_tiles = hw_pad // t_hw

    kernel = functools.partial(_dice_sums_kernel, hw_valid=HW, t_hw=t_hw,
                               c=C, need_mask=bool(pad))

    inter, card = pl.pallas_call(
        kernel,
        out_shape=(jax.ShapeDtypeStruct((B, C, 1), jnp.float32),
                   jax.ShapeDtypeStruct((B, C, 1), jnp.float32)),
        grid_spec=pltpu.PrefetchScalarGridSpec(
            num_scalar_prefetch=0,
            grid=(B, n_tiles),
            in_specs=[
                pl.BlockSpec((1, 1, t_hw), lambda b, j: (b, 0, j)),  # labels
                pl.BlockSpec((1, C, t_hw), lambda b, j: (b, 0, j)),  # logits
            ],
            out_specs=[
                pl.BlockSpec((1, C, 1), lambda b, j: (b, 0, 0)),  # intersect
                pl.BlockSpec((1, C, 1), lambda b, j: (b, 0, 0)),  # cardinality
            ],
        ),
        compiler_params=pltpu.CompilerParams(
            dimension_semantics=("parallel", "arbitrary")),
    )(labels3, logits3)

    # Tiny C-sized epilogue in plain JAX (reduce per-batch partials).
    inter = jnp.sum(inter[:, :, 0], axis=0)     # [C]
    card = jnp.sum(card[:, :, 0], axis=0)       # [C]
    dice = jnp.mean(2.0 * inter / (card + eps))
    return 1.0 - dice


def dice_loss_ref(logits, true, eps=1e-7):
    """Pure-JAX reference mirroring the PyTorch implementation."""
    C = logits.shape[1]
    one_hot = jax.nn.one_hot(true[:, 0], C, dtype=logits.dtype)   # [B,H,W,C]
    one_hot = jnp.transpose(one_hot, (0, 3, 1, 2))                # [B,C,H,W]
    probas = jax.nn.softmax(logits, axis=1)
    dims = (0, 2, 3)
    intersection = jnp.sum(probas * one_hot, axis=dims)
    cardinality = jnp.sum(probas + one_hot, axis=dims)
    return 1.0 - jnp.mean(2.0 * intersection / (cardinality + eps))


if __name__ == "__main__":
    key = jax.random.PRNGKey(0)
    k1, k2, k3, k4 = jax.random.split(key, 4)

    # Primary small case (matches the module's expected NCHW layout).
    B, C, H, W = 2, 4, 16, 16
    logits = jax.random.normal(k1, (B, C, H, W), dtype=jnp.float32)
    true = jax.random.randint(k2, (B, 1, H, W), 0, C, dtype=jnp.int32)

    out = jax.block_until_ready(dice_loss_pallas(logits, true))
    ref = dice_loss_ref(logits, true)
    assert jnp.allclose(out, ref, atol=1e-5, rtol=1e-5), (out, ref)

    # Second case with a non-multiple-of-128 spatial extent to exercise the
    # padded-column (last-tile-only) mask path.
    B2, C2, H2, W2 = 2, 4, 10, 10
    logits2 = jax.random.normal(k3, (B2, C2, H2, W2), dtype=jnp.float32)
    true2 = jax.random.randint(k4, (B2, 1, H2, W2), 0, C2, dtype=jnp.int32)

    out2 = jax.block_until_ready(dice_loss_pallas(logits2, true2))
    ref2 = dice_loss_ref(logits2, true2)
    assert jnp.allclose(out2, ref2, atol=1e-5, rtol=1e-5), (out2, ref2)

    print("KERNEL_OK")
</pallas_src>

<mosaic_0001>
module attributes {stable_mosaic.version = 11 : i64} {
  func.func @_dice_sums_kernel(%arg0: i32, %arg1: i32, %arg2: memref<1x1x256xi32, #tpu.memory_space<vmem>>, %arg3: memref<1x4x256xf32, #tpu.memory_space<vmem>>, %arg4: memref<1x4x1xf32, #tpu.memory_space<vmem>>, %arg5: memref<1x4x1xf32, #tpu.memory_space<vmem>>) attributes {dimension_semantics = [#tpu.dimension_semantics<parallel>, #tpu.dimension_semantics<arbitrary>], iteration_bounds = array<i64: 2, 1>, scalar_prefetch = 0 : i64, scratch_operands = 0 : i64, tpu.core_type = #tpu.core_type<tc>, window_params = [{transform_indices = @transform_0, window_bounds = array<i64: 1, 1, 256>}, {transform_indices = @transform_1, window_bounds = array<i64: 1, 4, 256>}, {transform_indices = @transform_2, window_bounds = array<i64: 1, 4, 1>}, {transform_indices = @transform_3, window_bounds = array<i64: 1, 4, 1>}]} {
    %c0_i32 = arith.constant 0 : i32
    %0 = arith.cmpi eq, %arg1, %c0_i32 : i32
    %1 = arith.extui %0 : i1 to i32
    %c0_i32_0 = arith.constant 0 : i32
    %2 = arith.cmpi ne, %1, %c0_i32_0 : i32
    scf.if %2 {
      %cst_21 = arith.constant 0.000000e+00 : f32
      %35 = vector.broadcast %cst_21 : f32 to vector<1x4x1xf32>
      %c0_22 = arith.constant 0 : index
      %c0_23 = arith.constant 0 : index
      %c0_24 = arith.constant 0 : index
      %36 = vector.load %arg4[%c0_22, %c0_23, %c0_24] : memref<1x4x1xf32, #tpu.memory_space<vmem>>, vector<1x4x1xf32>
      tpu.vector_store %arg4[%c0_22, %c0_23, %c0_24], %35 {strides = array<i32>} : memref<1x4x1xf32, #tpu.memory_space<vmem>>, vector<1x4x1xf32>,
      %cst_25 = arith.constant 0.000000e+00 : f32
      %37 = vector.broadcast %cst_25 : f32 to vector<1x4x1xf32>
      %c0_26 = arith.constant 0 : index
      %c0_27 = arith.constant 0 : index
      %c0_28 = arith.constant 0 : index
      %38 = vector.load %arg5[%c0_26, %c0_27, %c0_28] : memref<1x4x1xf32, #tpu.memory_space<vmem>>, vector<1x4x1xf32>
      tpu.vector_store %arg5[%c0_26, %c0_27, %c0_28], %37 {strides = array<i32>} : memref<1x4x1xf32, #tpu.memory_space<vmem>>, vector<1x4x1xf32>,
    } else {
    }
    %c0 = arith.constant 0 : index
    %c0_1 = arith.constant 0 : index
    %c0_2 = arith.constant 0 : index
    %3 = vector.load %arg3[%c0, %c0_1, %c0_2] : memref<1x4x256xf32, #tpu.memory_space<vmem>>, vector<1x4x256xf32>
    %4 = vector.shape_cast %3 : vector<1x4x256xf32> to vector<4x256xf32>
    %cst = arith.constant dense<0xFF800000> : vector<256xf32>
    %5 = vector.multi_reduction <maximumf>, %4, %cst [0] : vector<4x256xf32> to vector<256xf32>
    %6 = vector.shape_cast %5 : vector<256xf32> to vector<1x256xf32>
    %7 = vector.broadcast %6 : vector<1x256xf32> to vector<4x256xf32>
    %8 = arith.subf %4, %7 : vector<4x256xf32>
    %9 = math.exp %8 : vector<4x256xf32>
    %cst_3 = arith.constant dense<0.000000e+00> : vector<256xf32>
    %10 = vector.multi_reduction <add>, %9, %cst_3 [0] : vector<4x256xf32> to vector<256xf32>
    %11 = vector.shape_cast %10 : vector<256xf32> to vector<1x256xf32>
    %12 = vector.broadcast %11 : vector<1x256xf32> to vector<4x256xf32>
    %13 = arith.divf %9, %12 : vector<4x256xf32>
    %c0_4 = arith.constant 0 : index
    %c0_5 = arith.constant 0 : index
    %c0_6 = arith.constant 0 : index
    %14 = vector.load %arg2[%c0_4, %c0_5, %c0_6] : memref<1x1x256xi32, #tpu.memory_space<vmem>>, vector<1x1x256xi32>
    %15 = vector.shape_cast %14 : vector<1x1x256xi32> to vector<1x256xi32>
    %16 = tpu.iota {dimensions = array<i32: 0>} : vector<4x256xi32>
    %17 = vector.broadcast %15 : vector<1x256xi32> to vector<4x256xi32>
    %18 = arith.cmpi eq, %17, %16 : vector<4x256xi32>
    %19 = arith.extui %18 : vector<4x256xi1> to vector<4x256xi32>
    %20 = arith.sitofp %19 : vector<4x256xi32> to vector<4x256xf32>
    %c0_7 = arith.constant 0 : index
    %c0_8 = arith.constant 0 : index
    %c0_9 = arith.constant 0 : index
    %21 = vector.load %arg4[%c0_7, %c0_8, %c0_9] : memref<1x4x1xf32, #tpu.memory_space<vmem>>, vector<1x4x1xf32>
    %22 = arith.mulf %13, %20 : vector<4x256xf32>
    %cst_10 = arith.constant dense<0.000000e+00> : vector<4xf32>
    %23 = vector.multi_reduction <add>, %22, %cst_10 [1] : vector<4x256xf32> to vector<4xf32>
    %24 = vector.shape_cast %23 : vector<4xf32> to vector<4x1xf32>
    %25 = vector.shape_cast %24 : vector<4x1xf32> to vector<1x4x1xf32>
    %26 = arith.addf %21, %25 : vector<1x4x1xf32>
    %c0_11 = arith.constant 0 : index
    %c0_12 = arith.constant 0 : index
    %c0_13 = arith.constant 0 : index
    %27 = vector.load %arg4[%c0_11, %c0_12, %c0_13] : memref<1x4x1xf32, #tpu.memory_space<vmem>>, vector<1x4x1xf32>
    tpu.vector_store %arg4[%c0_11, %c0_12, %c0_13], %26 {strides = array<i32>} : memref<1x4x1xf32, #tpu.memory_space<vmem>>, vector<1x4x1xf32>,
    %c0_14 = arith.constant 0 : index
    %c0_15 = arith.constant 0 : index
    %c0_16 = arith.constant 0 : index
    %28 = vector.load %arg5[%c0_14, %c0_15, %c0_16] : memref<1x4x1xf32, #tpu.memory_space<vmem>>, vector<1x4x1xf32>
    %29 = arith.addf %13, %20 : vector<4x256xf32>
    %cst_17 = arith.constant dense<0.000000e+00> : vector<4xf32>
    %30 = vector.multi_reduction <add>, %29, %cst_17 [1] : vector<4x256xf32> to vector<4xf32>
    %31 = vector.shape_cast %30 : vector<4xf32> to vector<4x1xf32>
    %32 = vector.shape_cast %31 : vector<4x1xf32> to vector<1x4x1xf32>
    %33 = arith.addf %28, %32 : vector<1x4x1xf32>
    %c0_18 = arith.constant 0 : index
    %c0_19 = arith.constant 0 : index
    %c0_20 = arith.constant 0 : index
    %34 = vector.load %arg5[%c0_18, %c0_19, %c0_20] : memref<1x4x1xf32, #tpu.memory_space<vmem>>, vector<1x4x1xf32>
    tpu.vector_store %arg5[%c0_18, %c0_19, %c0_20], %33 {strides = array<i32>} : memref<1x4x1xf32, #tpu.memory_space<vmem>>, vector<1x4x1xf32>,
    return
  }
  func.func @transform_0(%arg0: i32, %arg1: i32) -> (i32, i32, i32) {
    %c0_i32 = arith.constant 0 : i32
    %c0_i32_0 = arith.constant 0 : i32
    return %arg0, %c0_i32, %arg1 : i32, i32, i32
  }
  func.func @transform_1(%arg0: i32, %arg1: i32) -> (i32, i32, i32) {
    %c0_i32 = arith.constant 0 : i32
    %c0_i32_0 = arith.constant 0 : i32
    return %arg0, %c0_i32, %arg1 : i32, i32, i32
  }
  func.func @transform_2(%arg0: i32, %arg1: i32) -> (i32, i32, i32) {
    %c0_i32 = arith.constant 0 : i32
    %c0_i32_0 = arith.constant 0 : i32
    %c0_i32_1 = arith.constant 0 : i32
    return %arg0, %c0_i32, %c0_i32_0 : i32, i32, i32
  }
  func.func @transform_3(%arg0: i32, %arg1: i32) -> (i32, i32, i32) {
    %c0_i32 = arith.constant 0 : i32
    %c0_i32_0 = arith.constant 0 : i32
    %c0_i32_1 = arith.constant 0 : i32
    return %arg0, %c0_i32, %c0_i32_0 : i32, i32, i32
  }
}

</mosaic_0001>

<llo_original>
// kernel: tpu_custom_call.1
$region0: #{tpu_custom_call.1}
  #allocation0 [shape = 'u32[]', space=smem, size = 0x4, offset = 0x4, fixed_abs, tag = 'smem constant byte address 0x4 - core index']
  #allocation1 [shape = 'u32[144,128]{1,0:T(1,128)}', space=vmem, size = 0x12000, scoped, tag = 'internal scratch']
  %s0 = inlined_call_operand.hbm [shape: s32[2,1,256], index: 0, kind: input, shape index: {}]
  %s1 = inlined_call_operand.hbm [shape: f32[2,4,256], index: 1, kind: input, shape index: {}]
  %s2 = inlined_call_operand.vmem [shape: f32[2,4,1], index: 2, kind: output, shape index: {0}]
  %s3 = inlined_call_operand.vmem [shape: f32[2,4,1], index: 3, kind: output, shape index: {1}]
  %4 = xla_tuple %s2, %s3
  %s5 = sld [smem:[#allocation0]]
  $region61: #{tpu_custom_call.1} parent=0
    _
  %s7 = ssub.s32 1, %s5
  %s8 = scalar_select 0, %s7, %s5
  $region1: #{tpu_custom_call.1} parent=0
    #allocation2 [shape = 'u8[2048]{0}', space=vmem, size = 0x800, scoped, tag = 'input window, operand 0']
    #allocation3 [shape = 's32[2]{0}', space=sflag, size = 0x8, scoped, tag = 'scoped memory for tpu_custom_call.1']
    #allocation4 [shape = 'u8[8192]{0}', space=vmem, size = 0x2000, scoped, tag = 'input window, operand 1']
    #allocation5 [shape = 's32[2]{0}', space=sflag, size = 0x8, scoped, tag = 'scoped memory for tpu_custom_call.1']
    %9 = vsyncpa [#allocation3], 0
    %s10 = scalar_lea.sflag [#allocation3], 1
    %11 = vsyncpa %s10, 0
    %12 = vsyncpa [#allocation5], 0
    %s13 = scalar_lea.sflag [#allocation5], 1
    %14 = vsyncpa %s13, 0
    loop: start=0, step=1, limit=4
    $region2: #{tpu_custom_call.1} parent=1 // loop_pre_header
      _
    $region3: #{tpu_custom_call.1} parent=1 // loop_header
      %s16 = sphi 0, %s20
      %p17 = scmp.ge.s32.totalorder %s16, 4
      %s23 = sphi 0, %s35
      %s24 = sphi 0, %s31
      %s25 = sphi 0, %s23
      %s26 = sphi 0, %s24
      %s27 = sphi 0, %s25
      %s28 = sphi 0, %s26
      %s40 = sphi 0, %s42
      %s43 = sphi 0, %s40
      %s44 = sphi 0, %s43
      %s60 = sphi 0, %s44
      %s68 = sphi 0, %s70
      %s71 = sphi 0, %s68
      %s72 = sphi 0, %s71
      %s88 = sphi 0, %s72
      %s94 = sphi 0, %s96
      %s97 = sphi 0, %s94
      %s98 = sphi 0, %s97
      %s114 = sphi 0, %s98
      %s120 = sphi 0, %s122
      %s123 = sphi 0, %s120
      %s124 = sphi 0, %s123
      %s140 = sphi 0, %s124
    $region4: #{tpu_custom_call.1} parent=1 // loop_header_branch
      %19 = sbr.rel (%p17) target = $region8
    $region5: #{tpu_custom_call.1} parent=1 // loop_body
      %s21 = ssub.s32 %s16, 1
      %s22 = ssub.s32 %s16, 2
      %s29 = sadd.s32 1, %s24
      %p30 = scmp.ge.s32.totalorder %s29, 1
      %s31 = scalar_select %p30, 0, %s29
      %s32 = sadd.s32 1, %s23
      %s33 = scalar_select %p30, %s32, %s23
      %p34 = scmp.ge.s32.totalorder %s33, 2
      %s35 = scalar_select %p34, 0, %s33
      %s36 = ssub.s32 %s23, %s35
      %s37 = ssub.s32 %s24, %s31
      %s38 = sor.u32 %s36, %s37
      %p39 = scmp.eq.s32.totalorder %s38, 0
      %s41 = sadd.s32 %s40, 1
      %s42 = scalar_select %p39, %s40, %s41
      %p45 = pneg %p39
      %p46 = scmp.eq.s32.totalorder %s16, 1
      %p47 = por %p45, %p46
      %p48 = scmp.ne.s32.totalorder %s40, %s43
      %p49 = scmp.eq.s32.totalorder %s16, 0
      %p50 = por %p48, %p49
      %p51 = scmp.ne.s32.totalorder %s40, %s43
      %p52 = scmp.eq.s32.totalorder %s21, 1
      %p53 = por %p51, %p52
      %p54 = scmp.ne.s32.totalorder %s43, %s44
      %p55 = scmp.eq.s32.totalorder %s21, 0
      %p56 = por %p54, %p55
      %p57 = scmp.ne.s32.totalorder %s43, %s44
      %p58 = scmp.eq.s32.totalorder %s22, 1
      %p59 = por %p57, %p58
      %p61 = scmp.ne.s32.totalorder %s44, %s60
      %p62 = scmp.eq.s32.totalorder %s22, 0
      %p63 = por %p61, %p62
      %s64 = ssub.s32 %s23, %s35
      %s65 = ssub.s32 %s24, %s31
      %s66 = sor.u32 %s64, %s65
      %p67 = scmp.eq.s32.totalorder %s66, 0
      %s69 = sadd.s32 %s68, 1
      %s70 = scalar_select %p67, %s68, %s69
      %p73 = pneg %p67
      %p74 = scmp.eq.s32.totalorder %s16, 1
      %p75 = por %p73, %p74
      %p76 = scmp.ne.s32.totalorder %s68, %s71
      %p77 = scmp.eq.s32.totalorder %s16, 0
      %p78 = por %p76, %p77
      %p79 = scmp.ne.s32.totalorder %s68, %s71
      %p80 = scmp.eq.s32.totalorder %s21, 1
      %p81 = por %p79, %p80
      %p82 = scmp.ne.s32.totalorder %s71, %s72
      %p83 = scmp.eq.s32.totalorder %s21, 0
      %p84 = por %p82, %p83
      %p85 = scmp.ne.s32.totalorder %s71, %s72
      %p86 = scmp.eq.s32.totalorder %s22, 1
      %p87 = por %p85, %p86
      %p89 = scmp.ne.s32.totalorder %s72, %s88
      %p90 = scmp.eq.s32.totalorder %s22, 0
      %p91 = por %p89, %p90
      %s92 = ssub.s32 %s23, %s35
      %p93 = scmp.eq.s32.totalorder %s92, 0
      %s95 = sadd.s32 %s94, 1
      %s96 = scalar_select %p93, %s94, %s95
      %p99 = pneg %p93
      %p100 = scmp.eq.s32.totalorder %s16, 1
      %p101 = por %p99, %p100
      %p102 = scmp.ne.s32.totalorder %s94, %s97
      %p103 = scmp.eq.s32.totalorder %s16, 0
      %p104 = por %p102, %p103
      %p105 = scmp.ne.s32.totalorder %s94, %s97
      %p106 = scmp.eq.s32.totalorder %s21, 1
      %p107 = por %p105, %p106
      %p108 = scmp.ne.s32.totalorder %s97, %s98
      %p109 = scmp.eq.s32.totalorder %s21, 0
      %p110 = por %p108, %p109
      %p111 = scmp.ne.s32.totalorder %s97, %s98
      %p112 = scmp.eq.s32.totalorder %s22, 1
      %p113 = por %p111, %p112
      %p115 = scmp.ne.s32.totalorder %s98, %s114
      %p116 = scmp.eq.s32.totalorder %s22, 0
      %p117 = por %p115, %p116
      %s118 = ssub.s32 %s23, %s35
      %p119 = scmp.eq.s32.totalorder %s118, 0
      %s121 = sadd.s32 %s120, 1
      %s122 = scalar_select %p119, %s120, %s121
      %p125 = pneg %p119
      %p126 = scmp.eq.s32.totalorder %s16, 1
      %p127 = por %p125, %p126
      %p128 = scmp.ne.s32.totalorder %s120, %s123
      %p129 = scmp.eq.s32.totalorder %s16, 0
      %p130 = por %p128, %p129
      %p131 = scmp.ne.s32.totalorder %s120, %s123
      %p132 = scmp.eq.s32.totalorder %s21, 1
      %p133 = por %p131, %p132
      %p134 = scmp.ne.s32.totalorder %s123, %s124
      %p135 = scmp.eq.s32.totalorder %s21, 0
      %p136 = por %p134, %p135
      %p137 = scmp.ne.s32.totalorder %s123, %s124
      %p138 = scmp.eq.s32.totalorder %s22, 1
      %p139 = por %p137, %p138
      %p141 = scmp.ne.s32.totalorder %s124, %s140
      %p142 = scmp.eq.s32.totalorder %s22, 0
      %p143 = por %p141, %p142
      %p144 = scmp.le.s32.totalorder 1, %s16
      %p145 = scmp.lt.s32.totalorder %s16, 3
      %p146 = pnand %p144, %p145
      %p147 = pneg %p146
      // Predicated region
      $region9: #{tpu_custom_call.1} parent=5 // pred_check
        _
      $region10: #{tpu_custom_call.1} parent=5 // pred_check_branch
        %149 = sbr.rel (%p146) target = $region12
      $region11: #{tpu_custom_call.1} parent=5 // pred_region
        %s150 = ssub.s32 %s16, 1
      $region12: #{tpu_custom_call.1} parent=5 // pred_fallthru
        _
      %p151 = scmp.lt.s32.totalorder %s16, 2
      // Predicated region
      $region13: #{tpu_custom_call.1} parent=5 // pred_check
        %p152 = pneg %p151
      $region14: #{tpu_custom_call.1} parent=5 // pred_check_branch
        %154 = sbr.rel (%p152) target = $region16
      $region15: #{tpu_custom_call.1} parent=5 // pred_region
        // Predicated region
        $region17: #{tpu_custom_call.1} parent=15 // pred_check
          %p155 = pneg %p50
        $region18: #{tpu_custom_call.1} parent=15 // pred_check_branch
          %157 = sbr.rel (%p155) target = $region20
        $region19: #{tpu_custom_call.1} parent=15 // pred_region
          %s158 = sand.u32 %s40, 1
          %s159 = scalar_lea.sflag [#allocation3], %s158
          %s160 = sand.u32 %s40, 1
          %s161 = smul.addr %s160, 2
          %s162 = scalar_lea.vmem [#allocation2], %s161
          %s163 = smul.u32 2, %s24
          %s165 = ssub.s32 32, 32
          %166 = vsyncadd %s159, %s165
          %s167 = smul.addr %s23, 2
          %s168 = sadd.s32 %s163, %s167
          %s169 = smul.addr %s168, 16
          %s170 = scalar_lea.hbm %s0, %s169
          %s172 = sshll.u32 %s162, 4
          %s173 = int_to_ptr.vmem [resolvable:$true] %s172
          %175 = dma.hbm_to_vmem [thread:$0]  %s170, 32, %s173, %s159
        $region20: #{tpu_custom_call.1} parent=15 // pred_fallthru
          _
        // Predicated region
        $region21: #{tpu_custom_call.1} parent=15 // pred_check
          %p176 = pneg %p78
        $region22: #{tpu_custom_call.1} parent=15 // pred_check_branch
          %178 = sbr.rel (%p176) target = $region24
        $region23: #{tpu_custom_call.1} parent=15 // pred_region
          %s179 = sand.u32 %s68, 1
          %s180 = scalar_lea.sflag [#allocation5], %s179
          %s181 = sand.u32 %s68, 1
          %s182 = smul.addr %s181, 8
          %s183 = scalar_lea.vmem [#allocation4], %s182
          %s184 = smul.u32 2, %s24
          %s186 = ssub.s32 128, 128
          %187 = vsyncadd %s180, %s186
          %s188 = smul.addr %s23, 2
          %s189 = sadd.s32 %s184, %s188
          %s190 = smul.addr %s189, 64
          %s191 = scalar_lea.hbm %s1, %s190
          %s193 = sshll.u32 %s183, 4
          %s194 = int_to_ptr.vmem [resolvable:$true] %s193
          %196 = dma.hbm_to_vmem [thread:$0]  %s191, 128, %s194, %s180
        $region24: #{tpu_custom_call.1} parent=15 // pred_fallthru
          _
      $region16: #{tpu_custom_call.1} parent=5 // pred_fallthru
        _
      %p197 = scmp.le.s32.totalorder 1, %s16
      %p198 = scmp.lt.s32.totalorder %s16, 3
      %p199 = pnand %p197, %p198
      %p200 = pneg %p199
      // Predicated region
      $region25: #{tpu_custom_call.1} parent=5 // pred_check
        _
      $region26: #{tpu_custom_call.1} parent=5 // pred_check_branch
        %202 = sbr.rel (%p199) target = $region28
      $region27: #{tpu_custom_call.1} parent=5 // pred_region
        %s203 = ssub.s32 %s16, 1
        %s204 = sand.u32 %s43, 1
        %s205 = scalar_lea.sflag [#allocation3], %s204
        %s206 = sand.u32 %s43, 1
        %s207 = smul.addr %s206, 2
        %s208 = scalar_lea.vmem [#allocation2], %s207
        // Predicated region
        $region29: #{tpu_custom_call.1} parent=27 // pred_check
          %p209 = pneg %p56
        $region30: #{tpu_custom_call.1} parent=27 // pred_check_branch
          %211 = sbr.rel (%p209) target = $region32
        $region31: #{tpu_custom_call.1} parent=27 // pred_region
          %212 = dma.done %s205, 32
        $region32: #{tpu_custom_call.1} parent=27 // pred_fallthru
          _
        %s213 = sand.u32 %s71, 1
        %s214 = scalar_lea.sflag [#allocation5], %s213
        %s215 = sand.u32 %s71, 1
        %s216 = smul.addr %s215, 8
        %s217 = scalar_lea.vmem [#allocation4], %s216
        // Predicated region
        $region33: #{tpu_custom_call.1} parent=27 // pred_check
          %p218 = pneg %p84
        $region34: #{tpu_custom_call.1} parent=27 // pred_check_branch
          %220 = sbr.rel (%p218) target = $region36
        $region35: #{tpu_custom_call.1} parent=27 // pred_region
          %221 = dma.done %s214, 128
        $region36: #{tpu_custom_call.1} parent=27 // pred_fallthru
          _
        %s222 = sand.u32 %s43, 1
        %s223 = scalar_lea.sflag [#allocation3], %s222
        %s224 = sand.u32 %s43, 1
        %s225 = smul.addr %s224, 2
        %s226 = scalar_lea.vmem [#allocation2], %s225
        %p227 = pneg %p56
        %p228 = pneg %p53
        %s229 = sand.u32 %s71, 1
        %s230 = scalar_lea.sflag [#allocation5], %s229
        %s231 = sand.u32 %s71, 1
        %s232 = smul.addr %s231, 8
        %s233 = scalar_lea.vmem [#allocation4], %s232
        %p234 = pneg %p84
        %p235 = pneg %p81
        %p236 = pneg %p110
        %p237 = pneg %p107
        %p238 = scmp.lt.s32.totalorder %s25, 1
        %s239 = scalar_select %p238, %s25, 1
        %s240 = smul.addr %s239, 4
        %s241 = scalar_lea.vmem %s2, %s240
        %p242 = pneg %p136
        %p243 = pneg %p133
        %p244 = scmp.lt.s32.totalorder %s25, 1
        %s245 = scalar_select %p244, %s25, 1
        %s246 = smul.addr %s245, 4
        %s247 = scalar_lea.vmem %s3, %s246
        %s248 = smul.u32 2, %s26
        %s249 = smul.u32 2, %s26
        %p250 = scmp.lt.s32.totalorder %s25, 1
        %s251 = scalar_select %p250, %s25, 1
        %s252 = smul.addr %s251, 4
        %s253 = scalar_lea.vmem %s2, %s252
        %p254 = scmp.lt.s32.totalorder %s25, 1
        %s255 = scalar_select %p254, %s25, 1
        %s256 = smul.addr %s255, 4
        %s257 = scalar_lea.vmem %s3, %s256
        %p258 = scmp.eq.s32.totalorder %s26, 0
        // Predicated region
        $region37: #{tpu_custom_call.1} parent=27 // pred_check
          %p259 = pneg %p258
        $region38: #{tpu_custom_call.1} parent=27 // pred_check_branch
          %261 = sbr.rel (%p259) target = $region40
        $region39: #{tpu_custom_call.1} parent=27 // pred_region
          %vm262 = vcmask 3072
          %263 = vst.msk [vmem:[%s253] sm:$0xf] %vm262, 0.0
          %264 = vst.msk [vmem:[%s257] sm:$0xf] %vm262, 0.0
        $region40: #{tpu_custom_call.1} parent=27 // pred_fallthru
          _
        %v265 = vld [vmem:[%s217] sm:$0xff]
        %v267 = vcombine.high %v265, %v265
        %vm269 = vcmask 1043456
        %v270 = vsel %vm269, %v265, -inf
        %v271 = vrot.slane %v270, 4
        %v272 = vmax.f32 %v270, %v271
        %v273 = vrot.slane %v272, 2
        %v274 = vmax.f32 %v272, %v273
        %v275 = vrot.slane %v274, 1
        %v276 = vmax.f32 %v274, %v275
        %v277 = vsel %vm269, %v267, -inf
        %v278 = vrot.slane %v277, 4
        %v279 = vmax.f32 %v277, %v278
        %v280 = vrot.slane %v279, 2
        %v281 = vmax.f32 %v279, %v280
        %v282 = vrot.slane %v281, 1
        %v283 = vmax.f32 %v281, %v282
        %v286 = vcombine.low %v276, %v283
        %v288 = vsub.f32 %v265, %v286
        %v289 = vmul.f32 %v288, 1.442695
        %v290 = vpow.pop %v289
        %v292 = vcombine.high %v290, %v290
        %v294 = vsel %vm269, %v290, 0.0
        %v295 = vrot.slane %v294, 4
        %v296 = vadd.f32 %v294, %v295
        %v297 = vrot.slane %v296, 2
        %v298 = vadd.f32 %v296, %v297
        %v299 = vrot.slane %v298, 1
        %v300 = vadd.f32 %v298, %v299
        %v301 = vsel %vm269, %v292, 0.0
        %v302 = vrot.slane %v301, 4
        %v303 = vadd.f32 %v301, %v302
        %v304 = vrot.slane %v303, 2
        %v305 = vadd.f32 %v303, %v304
        %v306 = vrot.slane %v305, 1
        %v307 = vadd.f32 %v305, %v306
        %v310 = vcombine.low %v300, %v307
        %v312 = vrcp.pop %v310
        %v313 = vmul.f32 %v290, %v312
        %v314 = vld [vmem:[%s208] sm:$0x3]
        %v315 = vlaneseq
        %v316 = vshrl.u32 %v315, 7
        %v317 = vlaneseq
        %v318 = vshrl.u32 %v317, 7
        %v319 = vsub.s32 0, %v318
        %v320 = vrot.slane %v314, %v319
        %v321 = vlaneseq
        %v322 = vshrl.u32 %v321, 7
        %v323 = vsub.s32 1, %v322
        %v324 = vrot.slane %v314, %v323
        %vm325 = vcmp.eq.s32.totalorder %v320, %v316
        %vm326 = vcmp.eq.s32.totalorder %v324, %v316
        %v327 = vsel %vm325, 1, 0
        %v328 = vsel %vm326, 1, 0
        %v329 = vcvt.s32.f32 %v327
        %v330 = vcvt.s32.f32 %v328
        %v331 = vld [vmem:[%s253] sm:$0xf]
        %v334 = vcombine.low %v329, %v330
        %v336 = vmul.f32 %v313, %v334
        %v338 = vcombine.high %v336, %v336
        %v340 = vsel %vm269, %v336, 0.0
        %v341 = vsel %vm269, %v338, 0.0
        %v342 = vadd.f32 %v340, %v341
        %343 = vadd.xlane.f32.xlu0 %v342
        %v344 = vpop.xlane.xlu0 %343
        %v345 = vadd.f32 %v331, %v344
        %vm346 = vcmask 3072
        %347 = vst.msk [vmem:[%s253] sm:$0xf] %vm346, %v345
        %v348 = vld [vmem:[%s257] sm:$0xf]
        %v349 = vadd.f32 %v313, %v334
        %v351 = vcombine.high %v349, %v349
        %v353 = vsel %vm269, %v349, 0.0
        %v354 = vsel %vm269, %v351, 0.0
        %v355 = vadd.f32 %v353, %v354
        %356 = vadd.xlane.f32.xlu0 %v355
        %v357 = vpop.xlane.xlu0 %356
        %v358 = vadd.f32 %v348, %v357
        %359 = vst.msk [vmem:[%s257] sm:$0xf] %vm346, %v358
        %p360 = scmp.lt.s32.totalorder %s25, 1
        %s361 = scalar_select %p360, %s25, 1
        %s362 = smul.addr %s361, 4
        %s363 = scalar_lea.vmem %s2, %s362
        %p364 = scmp.lt.s32.totalorder %s25, 1
        %s365 = scalar_select %p364, %s25, 1
        %s366 = smul.addr %s365, 4
        %s367 = scalar_lea.vmem %s3, %s366
        // Predicated region
        $region41: #{tpu_custom_call.1} parent=27 // pred_check
          %p368 = pneg %p107
        $region42: #{tpu_custom_call.1} parent=27 // pred_check_branch
          %370 = sbr.rel (%p368) target = $region44
        $region43: #{tpu_custom_call.1} parent=27 // pred_region
          _
        $region44: #{tpu_custom_call.1} parent=27 // pred_fallthru
          _
        // Predicated region
        $region45: #{tpu_custom_call.1} parent=27 // pred_check
          %p371 = pneg %p133
        $region46: #{tpu_custom_call.1} parent=27 // pred_check_branch
          %373 = sbr.rel (%p371) target = $region48
        $region47: #{tpu_custom_call.1} parent=27 // pred_region
          _
        $region48: #{tpu_custom_call.1} parent=27 // pred_fallthru
          _
      $region28: #{tpu_custom_call.1} parent=5 // pred_fallthru
        _
      %p374 = scmp.le.s32.totalorder 2, %s16
      // Predicated region
      $region49: #{tpu_custom_call.1} parent=5 // pred_check
        %p375 = pneg %p374
      $region50: #{tpu_custom_call.1} parent=5 // pred_check_branch
        %377 = sbr.rel (%p375) target = $region52
      $region51: #{tpu_custom_call.1} parent=5 // pred_region
        %s378 = ssub.s32 %s16, 2
        // Predicated region
        $region53: #{tpu_custom_call.1} parent=51 // pred_check
          %p379 = pneg %p113
        $region54: #{tpu_custom_call.1} parent=51 // pred_check_branch
          %381 = sbr.rel (%p379) target = $region56
        $region55: #{tpu_custom_call.1} parent=51 // pred_region
          %p382 = scmp.lt.s32.totalorder %s27, 1
          %s383 = scalar_select %p382, %s27, 1
          %s384 = smul.addr %s383, 4
          %s385 = scalar_lea.vmem %s2, %s384
        $region56: #{tpu_custom_call.1} parent=51 // pred_fallthru
          _
        // Predicated region
        $region57: #{tpu_custom_call.1} parent=51 // pred_check
          %p386 = pneg %p139
        $region58: #{tpu_custom_call.1} parent=51 // pred_check_branch
          %388 = sbr.rel (%p386) target = $region60
        $region59: #{tpu_custom_call.1} parent=51 // pred_region
          %p389 = scmp.lt.s32.totalorder %s27, 1
          %s390 = scalar_select %p389, %s27, 1
          %s391 = smul.addr %s390, 4
          %s392 = scalar_lea.vmem %s3, %s391
        $region60: #{tpu_custom_call.1} parent=51 // pred_fallthru
          _
      $region52: #{tpu_custom_call.1} parent=5 // pred_fallthru
        _
    $region6: #{tpu_custom_call.1} parent=1 // loop_footer
      %s20 = sadd.s32 1, %s16
    $region7: #{tpu_custom_call.1} parent=1 // loop_footer_branch
      %15 = sbr.rel target = $region3
    $region8: #{tpu_custom_call.1} parent=1 // loop_exit
      _
    %393 = vsyncpa [#allocation3], 1
    %s394 = scalar_lea.sflag [#allocation3], 1
    %395 = vsyncpa %s394, 1
    %396 = vsyncpa [#allocation5], 1
    %s397 = scalar_lea.sflag [#allocation5], 1
    %398 = vsyncpa %s397, 1

</llo_original>
